<compile_context>
chip_gen: v6e
topology: v6e:2x2x1
jax: 0.10.0
libtpu: 0.0.40
codegen_flags: <defaults>
</compile_context>

<pallas_src>
import jax
import jax.numpy as jnp
from jax.experimental import pallas as pl
from jax.experimental.pallas import tpu as pltpu


def _vmem_capacity_bytes():
    """Physical VMEM per TensorCore; conservative fallback if the query fails."""
    try:
        return int(pltpu.get_tpu_info().vmem_capacity_bytes)
    except Exception:
        return 64 * 2**20  # v7x per-TC size: the smallest of v5e/v6e/v7x


def _sq_diff_sum(x, axis):
    """sum((x[..., i+1, ...] - x[..., i, ...])**2) along `axis`.  x is f32."""
    ax = axis % x.ndim
    n = x.shape[ax]
    if n <= 1:
        return jnp.zeros((), jnp.float32)
    aligned = (x.shape[-1] % 128 == 0) and (x.shape[-2] % 8 == 0)
    if aligned:
        # XLU roll keeps the tile full-shape / aligned (no relayout copies).
        # The rolled difference covers every adjacent pair exactly once plus
        # ONE wrapped pair (first vs last); subtract that term instead of
        # masking the whole tile (saves ~3 VPU ops/element + int32 temps).
        # Squared sums are direction-invariant, so the roll convention does
        # not matter.
        rolled = pltpu.roll(x, shift=n - 1, axis=ax)
        d = rolled - x
        full = jnp.sum(d * d)
        first = jax.lax.slice_in_dim(x, 0, 1, axis=ax)
        last = jax.lax.slice_in_dim(x, n - 1, n, axis=ax)
        w = first - last
        return full - jnp.sum(w * w)
    # Small / unaligned dims (e.g. 16x16 test patch): plain slices, same math.
    d = (jax.lax.slice_in_dim(x, 1, n, axis=ax)
         - jax.lax.slice_in_dim(x, 0, n - 1, axis=ax))
    return jnp.sum(d * d)


def _tv_kernel(x_ref, out_ref):
    """x_ref: (TC, TH, W) tile; out_ref: (1, 1, 1, 8, 128) partial-sum slab."""
    # One upfront f32 cast: free while memory-bound, required on v5e (no bf16
    # VALU) and keeps the math identical to the f32 reference for bf16 inputs.
    x = x_ref[...].astype(jnp.float32)
    dh_ss = _sq_diff_sum(x, axis=-1)     # horizontal differences (along W)
    dv_ss = _sq_diff_sum(x, axis=-2)     # vertical differences (within H tile)
    rows = jax.lax.broadcasted_iota(jnp.int32, (8, 128), 0)
    slab = jnp.where(rows == 0, dh_ss, 0.0) + jnp.where(rows == 1, dv_ss, 0.0)
    out_ref[...] = slab[None, None, None, :, :]      # lane-dense, unmasked store


def _largest_fitting_divisor(n, unit_bytes, budget, multiple_of=1):
    """Largest divisor t of n with t*unit_bytes <= budget (and t % multiple_of == 0)."""
    best = None
    for t in range(1, n + 1):
        if n % t != 0:
            continue
        if t % multiple_of != 0:
            continue
        if t * unit_bytes <= budget:
            best = t
    return best


def tv_loss(adv_textures: jax.Array, coefficient: float = 1.0, *, use_pallas=None) -> jax.Array:
    """Pallas implementation of TVLoss.forward for NCHW input."""
    B, C, H, W = adv_textures.shape
    numel = B * C * H * W
    itemsize = jnp.dtype(adv_textures.dtype).itemsize

    if use_pallas is None:
        # Per-grid-step overhead dominates for tiny patches; let plain XLA
        # handle those and reserve the kernel for real workloads.
        # TODO(synk): fold small batches into one block (per-sample partials
        # inside the kernel) instead of falling back for mid-sized inputs.
        use_pallas = numel * itemsize >= (4 << 20)
    if not use_pallas:
        return _tv_loss_ref(adv_textures, coefficient)

    vmem_cap = _vmem_capacity_bytes()
    # ~5-8 MiB native-dtype blocks: amortize the ~0.35 us per-step cost while
    # leaving room for the double-buffered input + f32 intermediates.
    budget = min(8 << 20, max(1 << 20, vmem_cap // 12))

    row_bytes = W * itemsize
    per_channel_bytes = H * row_bytes

    tc, th = 1, H
    if per_channel_bytes <= budget:
        tc = _largest_fitting_divisor(C, per_channel_bytes, budget) or 1
    else:
        # Single channel exceeds the budget: tile over H.  TH must be a
        # multiple of 8 (sublane tiling constraint) and divide H; boundary-row
        # vertical differences are added back in the JAX wrapper below.
        cand = _largest_fitting_divisor(H, row_bytes, budget, multiple_of=8)
        if cand is not None and cand < H:
            th = cand
        # else: no legal H tile fits -> keep th = H and bump vmem_limit below
        # instead of silently overflowing (guard requested by review).

    n_ct = C // tc
    n_ht = H // th

    block_bytes = tc * th * W * itemsize
    block_f32_bytes = tc * th * W * 4
    # Double-buffered native input + a handful of f32 intermediates + slabs.
    needed = 2 * block_bytes + 5 * block_f32_bytes + (2 << 20)
    vmem_limit = int(min(vmem_cap, max(16 << 20, needed)))

    partials = pl.pallas_call(
        _tv_kernel,
        out_shape=jax.ShapeDtypeStruct((B, n_ct, n_ht, 8, 128), jnp.float32),
        grid_spec=pltpu.PrefetchScalarGridSpec(
            num_scalar_prefetch=0,
            grid=(B, n_ct, n_ht),
            in_specs=[
                # Squeeze the batch dim; kernel sees a (TC, TH, W) tile.
                pl.BlockSpec((pl.Squeezed(), tc, th, W),
                             lambda b, c, h: (b, c, h, 0)),
            ],
            # Each (batch, channel-tile, h-tile) writes its own (8, 128) slab:
            # no cross-iteration accumulation, so every grid axis is parallel.
            out_specs=pl.BlockSpec((1, 1, 1, 8, 128),
                                   lambda b, c, h: (b, c, h, 0, 0)),
        ),
        compiler_params=pltpu.CompilerParams(
            dimension_semantics=("parallel", "parallel", "parallel"),
            vmem_limit_bytes=vmem_limit,
        ),
    )(adv_textures)

    # Finalize in plain JAX: sum partial sums-of-squares over tiles, add the
    # cross-H-tile boundary terms (if any), sqrt per batch element (matching
    # torch.norm per sample), then sum over batch and scale.
    dh_ss = jnp.sum(partials[:, :, :, 0, 0], axis=(1, 2))    # (B,)
    dv_ss = jnp.sum(partials[:, :, :, 1, 0], axis=(1, 2))    # (B,)

    if n_ht > 1:
        # Vertical differences across H-tile boundaries: rows (k*TH - 1, k*TH).
        lo = adv_textures[:, :, th - 1:H - 1:th, :].astype(jnp.float32)
        hi = adv_textures[:, :, th:H:th, :].astype(jnp.float32)
        db = hi - lo
        dv_ss = dv_ss + jnp.sum(db * db, axis=(1, 2, 3))

    tv = jnp.sum(jnp.sqrt(dh_ss) + jnp.sqrt(dv_ss))
    return (coefficient * tv / numel).astype(jnp.float32)


def _tv_loss_ref(adv_textures: jax.Array, coefficient: float = 1.0) -> jax.Array:
    """Pure-JAX reference mirroring the PyTorch forward, for verification."""
    x = adv_textures.astype(jnp.float32)
    dh = x[:, :, :, 1:] - x[:, :, :, :-1]
    dv = x[:, :, 1:, :] - x[:, :, :-1, :]
    tvcomp1 = jnp.sqrt(jnp.sum(dh * dh, axis=(1, 2, 3)))
    tvcomp2 = jnp.sqrt(jnp.sum(dv * dv, axis=(1, 2, 3)))
    tv = jnp.sum(tvcomp1 + tvcomp2)
    return coefficient * tv / x.size


if __name__ == "__main__":
    key = jax.random.PRNGKey(0)
    # Small shapes consistent with a (B, C, H, W) adversarial patch.
    B, C, H, W = 2, 4, 16, 16
    adv_patch = jax.random.uniform(key, (B, C, H, W), dtype=jnp.float32)

    coefficient = 1.0  # deterministic "parameter" from __init__

    # Force the Pallas path so the kernel itself is exercised at this tiny size.
    out = tv_loss(adv_patch, coefficient, use_pallas=True)
    out = jax.block_until_ready(out)

    ref = _tv_loss_ref(adv_patch, coefficient)
    assert jnp.allclose(out, ref, rtol=1e-5, atol=1e-6), (out, ref)

    print("KERNEL_OK")
</pallas_src>

<mosaic_0001>
module attributes {stable_mosaic.version = 11 : i64} {
  func.func @_tv_kernel(%arg0: i32, %arg1: i32, %arg2: i32, %arg3: memref<1x4x16x16xf32, #tpu.memory_space<vmem>>, %arg4: memref<1x1x1x8x128xf32, #tpu.memory_space<vmem>>) attributes {dimension_semantics = [#tpu.dimension_semantics<parallel>, #tpu.dimension_semantics<parallel>, #tpu.dimension_semantics<parallel>], iteration_bounds = array<i64: 2, 1, 1>, scalar_prefetch = 0 : i64, scratch_operands = 0 : i64, tpu.core_type = #tpu.core_type<tc>, window_params = [{transform_indices = @transform_0, window_bounds = array<i64: 1, 4, 16, 16>}, {transform_indices = @transform_1, window_bounds = array<i64: 1, 1, 1, 8, 128>}]} {
    %c0 = arith.constant 0 : index
    %c0_0 = arith.constant 0 : index
    %c0_1 = arith.constant 0 : index
    %c0_2 = arith.constant 0 : index
    %0 = vector.load %arg3[%c0, %c0_0, %c0_1, %c0_2] : memref<1x4x16x16xf32, #tpu.memory_space<vmem>>, vector<1x4x16x16xf32>
    %1 = vector.shape_cast %0 : vector<1x4x16x16xf32> to vector<4x16x16xf32>
    %2 = vector.extract_strided_slice %1 {offsets = [0, 0, 1], sizes = [4, 16, 15], strides = [1, 1, 1]} : vector<4x16x16xf32> to vector<4x16x15xf32>
    %3 = vector.extract_strided_slice %1 {offsets = [0, 0, 0], sizes = [4, 16, 15], strides = [1, 1, 1]} : vector<4x16x16xf32> to vector<4x16x15xf32>
    %4 = arith.subf %2, %3 : vector<4x16x15xf32>
    %5 = arith.mulf %4, %4 : vector<4x16x15xf32>
    %6 = vector.shape_cast %5 : vector<4x16x15xf32> to vector<1x4x16x15xf32>
    %cst = arith.constant dense<0.000000e+00> : vector<1xf32>
    %7 = vector.multi_reduction <add>, %6, %cst [1, 2, 3] : vector<1x4x16x15xf32> to vector<1xf32>
    %8 = vector.shape_cast %7 : vector<1xf32> to vector<1x1x1x1xf32>
    %9 = vector.extract %8[0, 0, 0, 0] : f32 from vector<1x1x1x1xf32>
    %10 = vector.extract_strided_slice %1 {offsets = [0, 1, 0], sizes = [4, 15, 16], strides = [1, 1, 1]} : vector<4x16x16xf32> to vector<4x15x16xf32>
    %11 = vector.extract_strided_slice %1 {offsets = [0, 0, 0], sizes = [4, 15, 16], strides = [1, 1, 1]} : vector<4x16x16xf32> to vector<4x15x16xf32>
    %12 = arith.subf %10, %11 : vector<4x15x16xf32>
    %13 = arith.mulf %12, %12 : vector<4x15x16xf32>
    %14 = vector.shape_cast %13 : vector<4x15x16xf32> to vector<1x4x15x16xf32>
    %cst_3 = arith.constant dense<0.000000e+00> : vector<1xf32>
    %15 = vector.multi_reduction <add>, %14, %cst_3 [1, 2, 3] : vector<1x4x15x16xf32> to vector<1xf32>
    %16 = vector.shape_cast %15 : vector<1xf32> to vector<1x1x1x1xf32>
    %17 = vector.extract %16[0, 0, 0, 0] : f32 from vector<1x1x1x1xf32>
    %18 = tpu.iota {dimensions = array<i32: 0>} : vector<8x128xi32>
    %c0_i32 = arith.constant 0 : i32
    %19 = vector.broadcast %c0_i32 : i32 to vector<8x128xi32>
    %20 = arith.cmpi eq, %18, %19 : vector<8x128xi32>
    %cst_4 = arith.constant 0.000000e+00 : f32
    %21 = vector.broadcast %9 : f32 to vector<8x128xf32>
    %22 = vector.broadcast %cst_4 : f32 to vector<8x128xf32>
    %23 = arith.select %20, %21, %22 : vector<8x128xi1>, vector<8x128xf32>
    %c1_i32 = arith.constant 1 : i32
    %24 = vector.broadcast %c1_i32 : i32 to vector<8x128xi32>
    %25 = arith.cmpi eq, %18, %24 : vector<8x128xi32>
    %cst_5 = arith.constant 0.000000e+00 : f32
    %26 = vector.broadcast %17 : f32 to vector<8x128xf32>
    %27 = vector.broadcast %cst_5 : f32 to vector<8x128xf32>
    %28 = arith.select %25, %26, %27 : vector<8x128xi1>, vector<8x128xf32>
    %29 = arith.addf %23, %28 : vector<8x128xf32>
    %30 = vector.shape_cast %29 : vector<8x128xf32> to vector<1x1x1x8x128xf32>
    %c0_6 = arith.constant 0 : index
    %c0_7 = arith.constant 0 : index
    %c0_8 = arith.constant 0 : index
    %c0_9 = arith.constant 0 : index
    %c0_10 = arith.constant 0 : index
    %31 = vector.load %arg4[%c0_6, %c0_7, %c0_8, %c0_9, %c0_10] : memref<1x1x1x8x128xf32, #tpu.memory_space<vmem>>, vector<1x1x1x8x128xf32>
    tpu.vector_store %arg4[%c0_6, %c0_7, %c0_8, %c0_9, %c0_10], %30 {strides = array<i32>} : memref<1x1x1x8x128xf32, #tpu.memory_space<vmem>>, vector<1x1x1x8x128xf32>,
    return
  }
  func.func @transform_0(%arg0: i32, %arg1: i32, %arg2: i32) -> (i32, i32, i32, i32) {
    %c0_i32 = arith.constant 0 : i32
    %c0_i32_0 = arith.constant 0 : i32
    return %arg0, %arg1, %arg2, %c0_i32 : i32, i32, i32, i32
  }
  func.func @transform_1(%arg0: i32, %arg1: i32, %arg2: i32) -> (i32, i32, i32, i32, i32) {
    %c0_i32 = arith.constant 0 : i32
    %c0_i32_0 = arith.constant 0 : i32
    %c0_i32_1 = arith.constant 0 : i32
    return %arg0, %arg1, %arg2, %c0_i32, %c0_i32_0 : i32, i32, i32, i32, i32
  }
}

</mosaic_0001>

<llo_original>
// kernel: tpu_custom_call.1
$region0: #{tpu_custom_call.1}
  #allocation0 [shape = 'u32[]', space=smem, size = 0x4, offset = 0x4, fixed_abs, tag = 'smem constant byte address 0x4 - core index']
  #allocation1 [shape = 'u32[144,128]{1,0:T(1,128)}', space=vmem, size = 0x12000, scoped, tag = 'internal scratch']
  %s0 = inlined_call_operand.hbm [shape: f32[2,4,16,16], index: 0, kind: input, shape index: {}]
  %s1 = inlined_call_operand.hbm [shape: f32[2,1,1,8,128], index: 1, kind: output, shape index: {}]
  %s2 = sld [smem:[#allocation0]]
  $region41: #{tpu_custom_call.1} parent=0
    _
  %s4 = ssub.s32 1, %s2
  %s5 = scalar_select 0, %s4, %s2
  $region1: #{tpu_custom_call.1} parent=0
    #allocation2 [shape = 'u8[65536]{0}', space=vmem, size = 0x10000, scoped, tag = 'input window, operand 0']
    #allocation3 [shape = 's32[2]{0}', space=sflag, size = 0x8, scoped, tag = 'scoped memory for tpu_custom_call.1']
    #allocation4 [shape = 's32[2]{0}', space=sflag, size = 0x8, scoped, tag = 'scoped memory for tpu_custom_call.1']
    #allocation5 [shape = 'u8[8192]{0}', space=vmem, size = 0x2000, scoped, tag = 'output window, operand 0']
    %6 = vsyncpa [#allocation3], 0
    %s7 = scalar_lea.sflag [#allocation3], 1
    %8 = vsyncpa %s7, 0
    %9 = vsyncpa [#allocation4], 0
    %s10 = scalar_lea.sflag [#allocation4], 1
    %11 = vsyncpa %s10, 0
    loop: start=0, step=1, limit=4
    $region2: #{tpu_custom_call.1} parent=1 // loop_pre_header
      _
    $region3: #{tpu_custom_call.1} parent=1 // loop_header
      %s13 = sphi 0, %s17
      %p14 = scmp.ge.s32.totalorder %s13, 4
      %s20 = sphi 0, %s39
      %s21 = sphi 0, %s35
      %s22 = sphi 0, %s31
      %s23 = sphi 0, %s20
      %s24 = sphi 0, %s21
      %s25 = sphi 0, %s22
      %s26 = sphi 0, %s23
      %s27 = sphi 0, %s24
      %s28 = sphi 0, %s25
      %s46 = sphi 0, %s48
      %s49 = sphi 0, %s46
      %s50 = sphi 0, %s49
      %s66 = sphi 0, %s50
      %s76 = sphi 0, %s78
      %s79 = sphi 0, %s76
      %s80 = sphi 0, %s79
      %s96 = sphi 0, %s80
    $region4: #{tpu_custom_call.1} parent=1 // loop_header_branch
      %16 = sbr.rel (%p14) target = $region8
    $region5: #{tpu_custom_call.1} parent=1 // loop_body
      %s18 = ssub.s32 %s13, 1
      %s19 = ssub.s32 %s13, 2
      %s29 = sadd.s32 1, %s22
      %p30 = scmp.ge.s32.totalorder %s29, 1
      %s31 = scalar_select %p30, 0, %s29
      %s32 = sadd.s32 1, %s21
      %s33 = scalar_select %p30, %s32, %s21
      %p34 = scmp.ge.s32.totalorder %s33, 1
      %s35 = scalar_select %p34, 0, %s33
      %s36 = sadd.s32 1, %s20
      %s37 = scalar_select %p34, %s36, %s20
      %p38 = scmp.ge.s32.totalorder %s37, 2
      %s39 = scalar_select %p38, 0, %s37
      %s40 = ssub.s32 %s20, %s39
      %s41 = ssub.s32 %s21, %s35
      %s42 = sor.u32 %s40, %s41
      %s43 = ssub.s32 %s22, %s31
      %s44 = sor.u32 %s42, %s43
      %p45 = scmp.eq.s32.totalorder %s44, 0
      %s47 = sadd.s32 %s46, 1
      %s48 = scalar_select %p45, %s46, %s47
      %p51 = pneg %p45
      %p52 = scmp.eq.s32.totalorder %s13, 1
      %p53 = por %p51, %p52
      %p54 = scmp.ne.s32.totalorder %s46, %s49
      %p55 = scmp.eq.s32.totalorder %s13, 0
      %p56 = por %p54, %p55
      %p57 = scmp.ne.s32.totalorder %s46, %s49
      %p58 = scmp.eq.s32.totalorder %s18, 1
      %p59 = por %p57, %p58
      %p60 = scmp.ne.s32.totalorder %s49, %s50
      %p61 = scmp.eq.s32.totalorder %s18, 0
      %p62 = por %p60, %p61
      %p63 = scmp.ne.s32.totalorder %s49, %s50
      %p64 = scmp.eq.s32.totalorder %s19, 1
      %p65 = por %p63, %p64
      %p67 = scmp.ne.s32.totalorder %s50, %s66
      %p68 = scmp.eq.s32.totalorder %s19, 0
      %p69 = por %p67, %p68
      %s70 = ssub.s32 %s20, %s39
      %s71 = ssub.s32 %s21, %s35
      %s72 = sor.u32 %s70, %s71
      %s73 = ssub.s32 %s22, %s31
      %s74 = sor.u32 %s72, %s73
      %p75 = scmp.eq.s32.totalorder %s74, 0
      %s77 = sadd.s32 %s76, 1
      %s78 = scalar_select %p75, %s76, %s77
      %p81 = pneg %p75
      %p82 = scmp.eq.s32.totalorder %s13, 1
      %p83 = por %p81, %p82
      %p84 = scmp.ne.s32.totalorder %s76, %s79
      %p85 = scmp.eq.s32.totalorder %s13, 0
      %p86 = por %p84, %p85
      %p87 = scmp.ne.s32.totalorder %s76, %s79
      %p88 = scmp.eq.s32.totalorder %s18, 1
      %p89 = por %p87, %p88
      %p90 = scmp.ne.s32.totalorder %s79, %s80
      %p91 = scmp.eq.s32.totalorder %s18, 0
      %p92 = por %p90, %p91
      %p93 = scmp.ne.s32.totalorder %s79, %s80
      %p94 = scmp.eq.s32.totalorder %s19, 1
      %p95 = por %p93, %p94
      %p97 = scmp.ne.s32.totalorder %s80, %s96
      %p98 = scmp.eq.s32.totalorder %s19, 0
      %p99 = por %p97, %p98
      %p100 = scmp.le.s32.totalorder 1, %s13
      %p101 = scmp.lt.s32.totalorder %s13, 3
      %p102 = pnand %p100, %p101
      %p103 = pneg %p102
      // Predicated region
      $region9: #{tpu_custom_call.1} parent=5 // pred_check
        _
      $region10: #{tpu_custom_call.1} parent=5 // pred_check_branch
        %105 = sbr.rel (%p102) target = $region12
      $region11: #{tpu_custom_call.1} parent=5 // pred_region
        %s106 = ssub.s32 %s13, 1
      $region12: #{tpu_custom_call.1} parent=5 // pred_fallthru
        _
      %p107 = scmp.lt.s32.totalorder %s13, 2
      // Predicated region
      $region13: #{tpu_custom_call.1} parent=5 // pred_check
        %p108 = pneg %p107
      $region14: #{tpu_custom_call.1} parent=5 // pred_check_branch
        %110 = sbr.rel (%p108) target = $region16
      $region15: #{tpu_custom_call.1} parent=5 // pred_region
        // Predicated region
        $region17: #{tpu_custom_call.1} parent=15 // pred_check
          %p111 = pneg %p56
        $region18: #{tpu_custom_call.1} parent=15 // pred_check_branch
          %113 = sbr.rel (%p111) target = $region20
        $region19: #{tpu_custom_call.1} parent=15 // pred_region
          %s114 = sand.u32 %s46, 1
          %s115 = scalar_lea.sflag [#allocation3], %s114
          %s116 = sand.u32 %s46, 1
          %s117 = smul.addr %s116, 64
          %s118 = scalar_lea.vmem [#allocation2], %s117
          %s119 = smul.u32 4, %s21
          %s120 = smul.u32 2, %s22
          %s122 = ssub.s32 1024, 1024
          %123 = vsyncadd %s115, %s122
          %s124 = smul.addr %s119, 2
          %s125 = sadd.s32 %s120, %s124
          %s126 = smul.addr %s20, 8
          %s127 = sadd.s32 %s125, %s126
          %s128 = smul.addr %s127, 128
          %s129 = scalar_lea.hbm %s0, %s128
          %s130 = sshll.u32 %s118, 4
          %s131 = int_to_ptr.vmem [resolvable:$true] %s130
          %136 = dma.hbm_to_vmem [thread:$0]  %s129, 1024, %s131, %s115, 128, 128, 8
        $region20: #{tpu_custom_call.1} parent=15 // pred_fallthru
          _
      $region16: #{tpu_custom_call.1} parent=5 // pred_fallthru
        _
      %p137 = scmp.le.s32.totalorder 1, %s13
      %p138 = scmp.lt.s32.totalorder %s13, 3
      %p139 = pnand %p137, %p138
      %p140 = pneg %p139
      // Predicated region
      $region21: #{tpu_custom_call.1} parent=5 // pred_check
        _
      $region22: #{tpu_custom_call.1} parent=5 // pred_check_branch
        %142 = sbr.rel (%p139) target = $region24
      $region23: #{tpu_custom_call.1} parent=5 // pred_region
        %s143 = ssub.s32 %s13, 1
        %s144 = sand.u32 %s49, 1
        %s145 = scalar_lea.sflag [#allocation3], %s144
        %s146 = sand.u32 %s49, 1
        %s147 = smul.addr %s146, 64
        %s148 = scalar_lea.vmem [#allocation2], %s147
        // Predicated region
        $region25: #{tpu_custom_call.1} parent=23 // pred_check
          %p149 = pneg %p62
        $region26: #{tpu_custom_call.1} parent=23 // pred_check_branch
          %151 = sbr.rel (%p149) target = $region28
        $region27: #{tpu_custom_call.1} parent=23 // pred_region
          %152 = dma.done %s145, 1024
        $region28: #{tpu_custom_call.1} parent=23 // pred_fallthru
          _
        %s153 = sand.u32 %s49, 1
        %s154 = scalar_lea.sflag [#allocation3], %s153
        %s155 = sand.u32 %s49, 1
        %s156 = smul.addr %s155, 64
        %s157 = scalar_lea.vmem [#allocation2], %s156
        %p158 = pneg %p62
        %p159 = pneg %p59
        %p160 = pneg %p92
        %p161 = pneg %p89
        %s162 = sand.u32 %s79, 1
        %s163 = scalar_lea.sflag [#allocation4], %s162
        %s164 = sand.u32 %s79, 1
        %s165 = smul.addr %s164, 8
        %s166 = scalar_lea.vmem [#allocation5], %s165
        %s167 = smul.u32 4, %s24
        %s168 = smul.u32 2, %s25
        %v169 = vld [vmem:[%s148] sm:$0xff]
        %v170 = vld [vmem:[%s148 + $0x8] sm:$0xff]
        %v171 = vld [vmem:[%s148 + $0x10] sm:$0xff]
        %v172 = vld [vmem:[%s148 + $0x18] sm:$0xff]
        %v173 = vld [vmem:[%s148 + $0x20] sm:$0xff]
        %v174 = vld [vmem:[%s148 + $0x28] sm:$0xff]
        %v175 = vld [vmem:[%s148 + $0x30] sm:$0xff]
        %v176 = vld [vmem:[%s148 + $0x38] sm:$0xff]
        %185 = vrot.lane.b32.xlu0 %v169, 1
        %v186 = vpop.permute.xlu0 %185
        %187 = vrot.lane.b32.xlu0 %v170, 1
        %v188 = vpop.permute.xlu0 %187
        %189 = vrot.lane.b32.xlu0 %v171, 1
        %v190 = vpop.permute.xlu0 %189
        %191 = vrot.lane.b32.xlu0 %v172, 1
        %v192 = vpop.permute.xlu0 %191
        %193 = vrot.lane.b32.xlu0 %v173, 1
        %v194 = vpop.permute.xlu0 %193
        %195 = vrot.lane.b32.xlu0 %v174, 1
        %v196 = vpop.permute.xlu0 %195
        %197 = vrot.lane.b32.xlu0 %v175, 1
        %v198 = vpop.permute.xlu0 %197
        %199 = vrot.lane.b32.xlu0 %v176, 1
        %v200 = vpop.permute.xlu0 %199
        %v209 = vsub.f32 %v169, %v186
        %v210 = vsub.f32 %v170, %v188
        %v211 = vsub.f32 %v171, %v190
        %v212 = vsub.f32 %v172, %v192
        %v213 = vsub.f32 %v173, %v194
        %v214 = vsub.f32 %v174, %v196
        %v215 = vsub.f32 %v175, %v198
        %v216 = vsub.f32 %v176, %v200
        %v217 = vmul.f32 %v209, %v209
        %v218 = vmul.f32 %v210, %v210
        %v219 = vmul.f32 %v211, %v211
        %v220 = vmul.f32 %v212, %v212
        %v221 = vmul.f32 %v213, %v213
        %v222 = vmul.f32 %v214, %v214
        %v223 = vmul.f32 %v215, %v215
        %v224 = vmul.f32 %v216, %v216
        %233 = vrot.lane.b32.xlu0 %v217, 127
        %v234 = vpop.permute.xlu0 %233
        %235 = vrot.lane.b32.xlu0 %v218, 127
        %v236 = vpop.permute.xlu0 %235
        %237 = vrot.lane.b32.xlu0 %v219, 127
        %v238 = vpop.permute.xlu0 %237
        %239 = vrot.lane.b32.xlu0 %v220, 127
        %v240 = vpop.permute.xlu0 %239
        %241 = vrot.lane.b32.xlu0 %v221, 127
        %v242 = vpop.permute.xlu0 %241
        %243 = vrot.lane.b32.xlu0 %v222, 127
        %v244 = vpop.permute.xlu0 %243
        %245 = vrot.lane.b32.xlu0 %v223, 127
        %v246 = vpop.permute.xlu0 %245
        %247 = vrot.lane.b32.xlu0 %v224, 127
        %v248 = vpop.permute.xlu0 %247
        %vm257 = vcmask 121856
        %v258 = vsel %vm257, %v234, 0.0
        %v259 = vsel %vm257, %v236, 0.0
        %v260 = vadd.f32 %v258, %v259
        %v261 = vsel %vm257, %v238, 0.0
        %v262 = vadd.f32 %v260, %v261
        %v263 = vsel %vm257, %v240, 0.0
        %v264 = vadd.f32 %v262, %v263
        %v265 = vsel %vm257, %v242, 0.0
        %v266 = vadd.f32 %v264, %v265
        %v267 = vsel %vm257, %v244, 0.0
        %v268 = vadd.f32 %v266, %v267
        %v269 = vsel %vm257, %v246, 0.0
        %v270 = vadd.f32 %v268, %v269
        %v271 = vsel %vm257, %v248, 0.0
        %v272 = vadd.f32 %v270, %v271
        %273 = vadd.xlane.f32.xlu0 %v272
        %v274 = vpop.xlane.xlu0 %273
        %v275 = vrot.slane %v274, 4
        %v276 = vadd.f32 %v274, %v275
        %v277 = vrot.slane %v276, 2
        %v278 = vadd.f32 %v276, %v277
        %v279 = vrot.slane %v278, 1
        %v280 = vadd.f32 %v278, %v279
        %s281 = vtos %v280
        %vm282 = vcmask 1040384
        %v283 = vrot.slane %v169, 7
        %v284 = vrot.slane %v170, 7
        %v285 = vsel %vm282, %v283, %v284
        %v286 = vrot.slane %v171, 7
        %v287 = vrot.slane %v172, 7
        %v288 = vsel %vm282, %v286, %v287
        %v289 = vrot.slane %v173, 7
        %v290 = vrot.slane %v174, 7
        %v291 = vsel %vm282, %v289, %v290
        %v292 = vrot.slane %v175, 7
        %v293 = vrot.slane %v176, 7
        %v294 = vsel %vm282, %v292, %v293
        %v303 = vsub.f32 %v169, %v283
        %v304 = vsub.f32 %v170, %v285
        %v305 = vsub.f32 %v171, %v286
        %v306 = vsub.f32 %v172, %v288
        %v307 = vsub.f32 %v173, %v289
        %v308 = vsub.f32 %v174, %v291
        %v309 = vsub.f32 %v175, %v292
        %v310 = vsub.f32 %v176, %v294
        %v311 = vmul.f32 %v303, %v303
        %v312 = vmul.f32 %v304, %v304
        %v313 = vmul.f32 %v305, %v305
        %v314 = vmul.f32 %v306, %v306
        %v315 = vmul.f32 %v307, %v307
        %v316 = vmul.f32 %v308, %v308
        %v317 = vmul.f32 %v309, %v309
        %v318 = vmul.f32 %v310, %v310
        %vm327 = vcmask 1046528
        %v328 = vrot.slane %v311, 1
        %v329 = vrot.slane %v312, 1
        %v330 = vsel %vm327, %v328, %v329
        %v331 = vrot.slane %v313, 1
        %v332 = vrot.slane %v314, 1
        %v333 = vsel %vm327, %v331, %v332
        %v334 = vrot.slane %v315, 1
        %v335 = vrot.slane %v316, 1
        %v336 = vsel %vm327, %v334, %v335
        %v337 = vrot.slane %v317, 1
        %v338 = vrot.slane %v318, 1
        %v339 = vsel %vm327, %v337, %v338
        %vm348 = vcmask 130048
        %v349 = vsel %vm348, %v330, 0.0
        %vm350 = vcmask 129024
        %v351 = vsel %vm350, %v329, 0.0
        %v352 = vadd.f32 %v349, %v351
        %v353 = vsel %vm348, %v333, 0.0
        %v354 = vadd.f32 %v352, %v353
        %v355 = vsel %vm350, %v332, 0.0
        %v356 = vadd.f32 %v354, %v355
        %v357 = vsel %vm348, %v336, 0.0
        %v358 = vadd.f32 %v356, %v357
        %v359 = vsel %vm350, %v335, 0.0
        %v360 = vadd.f32 %v358, %v359
        %v361 = vsel %vm348, %v339, 0.0
        %v362 = vadd.f32 %v360, %v361
        %v363 = vsel %vm350, %v338, 0.0
        %v364 = vadd.f32 %v362, %v363
        %365 = vadd.xlane.f32.xlu0 %v364
        %v366 = vpop.xlane.xlu0 %365
        %v367 = vrot.slane %v366, 4
        %v368 = vadd.f32 %v366, %v367
        %v369 = vrot.slane %v368, 2
        %v370 = vadd.f32 %v368, %v369
        %v371 = vrot.slane %v370, 1
        %v372 = vadd.f32 %v370, %v371
        %s373 = vtos %v372
        %v374 = vlaneseq
        %v375 = vshrl.u32 %v374, 7
        %vm376 = vcmp.eq.s32.totalorder %v375, 0
        %v377 = vstv %s281
        %v378 = vsel %vm376, %v377, 0.0
        %vm379 = vcmp.eq.s32.totalorder %v375, 1
        %v380 = vstv %s373
        %v381 = vsel %vm379, %v380, 0.0
        %v382 = vadd.f32 %v378, %v381
        %383 = vst [vmem:[%s166] sm:$0xff] %v382
        %s384 = sand.u32 %s79, 1
        %s385 = scalar_lea.sflag [#allocation4], %s384
        %s386 = sand.u32 %s79, 1
        %s387 = smul.addr %s386, 8
        %s388 = scalar_lea.vmem [#allocation5], %s387
        // Predicated region
        $region29: #{tpu_custom_call.1} parent=23 // pred_check
          %p389 = pneg %p89
        $region30: #{tpu_custom_call.1} parent=23 // pred_check_branch
          %391 = sbr.rel (%p389) target = $region32
        $region31: #{tpu_custom_call.1} parent=23 // pred_region
          %s393 = ssub.s32 128, 128
          %394 = vsyncadd %s385, %s393
          %s395 = sadd.s32 %s25, %s24
          %s396 = sadd.s32 %s395, %s23
          %s397 = smul.addr %s396, 128
          %s398 = scalar_lea.hbm %s1, %s397
          %s400 = sshll.u32 %s388, 4
          %s401 = int_to_ptr.vmem [resolvable:$true] %s400
          %403 = dma.vmem_to_hbm [thread:$0]  %s401, 128, %s398, %s385
        $region32: #{tpu_custom_call.1} parent=23 // pred_fallthru
          _
      $region24: #{tpu_custom_call.1} parent=5 // pred_fallthru
        _
      %p404 = scmp.le.s32.totalorder 2, %s13
      // Predicated region
      $region33: #{tpu_custom_call.1} parent=5 // pred_check
        %p405 = pneg %p404
      $region34: #{tpu_custom_call.1} parent=5 // pred_check_branch
        %407 = sbr.rel (%p405) target = $region36
      $region35: #{tpu_custom_call.1} parent=5 // pred_region
        %s408 = ssub.s32 %s13, 2
        // Predicated region
        $region37: #{tpu_custom_call.1} parent=35 // pred_check
          %p409 = pneg %p95
        $region38: #{tpu_custom_call.1} parent=35 // pred_check_branch
          %411 = sbr.rel (%p409) target = $region40
        $region39: #{tpu_custom_call.1} parent=35 // pred_region
          %s412 = sand.u32 %s80, 1
          %s413 = scalar_lea.sflag [#allocation4], %s412
          %s414 = sand.u32 %s80, 1
          %s415 = smul.addr %s414, 8
          %s416 = scalar_lea.vmem [#allocation5], %s415
          %417 = dma.done %s413, 128
        $region40: #{tpu_custom_call.1} parent=35 // pred_fallthru
          _
      $region36: #{tpu_custom_call.1} parent=5 // pred_fallthru
        _
    $region6: #{tpu_custom_call.1} parent=1 // loop_footer
      %s17 = sadd.s32 1, %s13
    $region7: #{tpu_custom_call.1} parent=1 // loop_footer_branch
      %12 = sbr.rel target = $region3
    $region8: #{tpu_custom_call.1} parent=1 // loop_exit
      _
    %418 = vsyncpa [#allocation3], 1
    %s419 = scalar_lea.sflag [#allocation3], 1
    %420 = vsyncpa %s419, 1
    %421 = vsyncpa [#allocation4], 1
    %s422 = scalar_lea.sflag [#allocation4], 1
    %423 = vsyncpa %s422, 1

</llo_original>
